<compile_context>
chip_gen: v6e
topology: v6e:2x2x1
jax: 0.10.0
libtpu: 0.0.40
codegen_flags: <defaults>
</compile_context>

<pallas_src>
import functools

import jax
import jax.numpy as jnp
from jax.experimental import pallas as pl
from jax.experimental.pallas import tpu as pltpu


# ----------------------------------------------------------------------------
# Weight preprocessing (plain-JAX glue, done ONCE per parameter set)
# ----------------------------------------------------------------------------
def conv_to_matrix(w, H, W, padding):
    """Dense matrix M of shape (Cin*H*W, Cout*H*W) s.t. out_flat = x_flat @ M,
    with channel-major flattening (ci*H*W + i*W + j). Built exactly by pushing a
    one-hot basis through lax.conv at HIGHEST precision."""
    Cout, Cin, K, _ = w.shape
    S = H * W
    eye = jnp.eye(Cin * S, dtype=jnp.float32).reshape(Cin * S, Cin, H, W)
    out = jax.lax.conv_general_dilated(
        eye, w.astype(jnp.float32),
        window_strides=(1, 1),
        padding=((padding, padding), (padding, padding)),
        dimension_numbers=("NCHW", "OIHW", "NCHW"),
        precision=jax.lax.Precision.HIGHEST)
    return out.reshape(Cin * S, Cout * S)


def fanbeam_bp_matrix(angles, det_count, width,
                      src_dist=None, det_dist=None, det_spacing=2.0):
    """M of shape (n_angles*det_count, width*width) s.t. backprojected image = sino_flat @ M."""
    # TODO(synk): exact numerical parity with torch-radon's FanBeam backprojector (its geometry
    # conventions / fan-beam distance weighting) is not guaranteed; this is a standard
    # flat-detector fan-beam backprojection with linear detector interpolation.
    if src_dist is None:
        src_dist = float(det_count)
    if det_dist is None:
        det_dist = src_dist

    c = (width - 1) / 2.0
    xs = jnp.arange(width, dtype=jnp.float32) - c      # x coord per image column
    ys = c - jnp.arange(width, dtype=jnp.float32)      # y coord per image row (row 0 = top)
    Y, X = jnp.meshgrid(ys, xs, indexing="ij")          # (W, W)

    sin_t = jnp.sin(angles)[:, None, None]               # (A, 1, 1)
    cos_t = jnp.cos(angles)[:, None, None]

    pn = X * sin_t - Y * cos_t                            # dot(P, n)
    pd = X * cos_t + Y * sin_t                            # dot(P, d)
    denom = pn + src_dist
    valid = denom > 1e-3                                  # mask rays passing behind the source
    t = (src_dist + det_dist) / jnp.where(valid, denom, 1.0)
    u = t * pd                                            # detector coordinate
    fidx = u / det_spacing + (det_count - 1) / 2.0        # continuous detector index

    i0 = jnp.floor(fidx).astype(jnp.int32)                # (A, W, W)
    frac = fidx - i0.astype(jnp.float32)

    j = jnp.arange(det_count, dtype=jnp.int32)[None, :, None, None]   # (1, D, 1, 1)
    i0e = i0[:, None, :, :]
    fre = frac[:, None, :, :]
    M = ((j == i0e).astype(jnp.float32) * (1.0 - fre)
         + (j == (i0e + 1)).astype(jnp.float32) * fre)    # (A, D, W, W)
    M = M * valid[:, None, :, :].astype(jnp.float32)
    n_angles = angles.shape[0]
    return M.reshape(n_angles * det_count, width * width).astype(jnp.float32)


def build_operators(params, angles, n_angles, det_count, width):
    """Folds the (purely affine) network into a handful of small dense operators."""
    S_sino = n_angles * det_count
    S_img = width * width
    f32 = jnp.float32

    m1 = conv_to_matrix(params["w1"], n_angles, det_count, 2)           # (128, 512)
    m2 = conv_to_matrix(params["w2"], n_angles, det_count, 2)           # (512, 128)
    b1 = jnp.repeat(params["b1"].astype(f32), S_sino)[None, :]          # (1, 512)
    b2 = jnp.repeat(params["b2"].astype(f32), S_sino)[None, :]          # (1, 128)
    m3 = conv_to_matrix(params["w3"], width, width, 1)                   # (512, 256)
    b3 = jnp.repeat(params["b3"].astype(f32), S_img)[None, :]            # (1, 256)
    bp = fanbeam_bp_matrix(angles, det_count, width)                     # (128, 256)

    # Fold conv1 ∘ conv2 (no activation between them) into one affine map.
    m12 = m1 @ m2                                                        # (128, 128)
    c12 = b1 @ m2 + b2                                                   # (1, 128)
    # Split conv3 along its input channels (removes the lane concat) and fold bp into the
    # img0 branch: img_pred = BP(x) @ m3_top + BP(sp) @ m3_bot + b3 = x @ bpa + img1 @ m3_bot + b3.
    m3_top, m3_bot = m3[:S_img], m3[S_img:]                              # (256, 256) each
    bpa = bp @ m3_top                                                    # (128, 256)

    bf16 = jnp.bfloat16
    return dict(
        m12=m12.astype(bf16), c12=c12,
        bp=bp.astype(bf16), bpa=bpa.astype(bf16),
        m3_bot=m3_bot.astype(bf16), b3=b3,
        bp_f32=bp,   # kept only for the plain-JAX reference check
    )


# ----------------------------------------------------------------------------
# Fused forward kernel: whole batch as the M dimension, everything on the MXU
# ----------------------------------------------------------------------------
def _testnet_fused_kernel(x_ref, m12_ref, c12_ref, bp_ref, bpa_ref, m3b_ref, b3_ref,
                          sino_pred_ref, img1_ref, img_pred_ref):
    f32 = jnp.float32
    x = x_ref[...]                                                          # (Bp, 128) bf16
    # sino net: conv1 ∘ conv2 folded offline into a single affine operator.
    sp = jnp.dot(x, m12_ref[...], preferred_element_type=f32) + c12_ref[...]   # (Bp, 128) f32
    sino_pred_ref[...] = sp
    # fan-beam backprojection of the predicted-sinogram channel (also an output).
    img1 = jnp.dot(sp.astype(jnp.bfloat16), bp_ref[...],
                   preferred_element_type=f32)                                 # (Bp, 256) f32
    img1_ref[...] = img1
    # img net: conv3 on [BP(sino) | BP(sino_pred)] without a concat:
    #   img_pred = x @ (bp @ m3_top) + img1 @ m3_bot + b3
    img_pred_ref[...] = (
        jnp.dot(x, bpa_ref[...], preferred_element_type=f32)
        + jnp.dot(img1.astype(jnp.bfloat16), m3b_ref[...], preferred_element_type=f32)
        + b3_ref[...])                                                         # (Bp, 256) f32


def testnet_forward(sino, ops, *, width):
    """sino: (B, 1, n_angles, det_count) f32; ops: precomputed (folded) operator matrices."""
    B, _, A, D = sino.shape
    S_sino = A * D
    S_img = width * width
    Bp = max(8, ((B + 7) // 8) * 8)        # pad batch rows -> unmasked full-vreg stores

    x = sino.reshape(B, S_sino).astype(jnp.bfloat16)
    x = jnp.pad(x, ((0, Bp - B), (0, 0)))

    def full(arr):
        nd = arr.ndim
        return pl.BlockSpec(arr.shape, lambda i, _nd=nd: (0,) * _nd)

    sino_pred, img1, img_pred = pl.pallas_call(
        _testnet_fused_kernel,
        out_shape=(
            jax.ShapeDtypeStruct((Bp, S_sino), jnp.float32),
            jax.ShapeDtypeStruct((Bp, S_img), jnp.float32),
            jax.ShapeDtypeStruct((Bp, S_img), jnp.float32),
        ),
        grid=(1,),
        in_specs=[
            full(x),
            full(ops["m12"]), full(ops["c12"]),
            full(ops["bp"]), full(ops["bpa"]),
            full(ops["m3_bot"]), full(ops["b3"]),
        ],
        out_specs=(
            pl.BlockSpec((Bp, S_sino), lambda i: (0, 0)),
            pl.BlockSpec((Bp, S_img), lambda i: (0, 0)),
            pl.BlockSpec((Bp, S_img), lambda i: (0, 0)),
        ),
        compiler_params=pltpu.CompilerParams(
            dimension_semantics=("arbitrary",)),
    )(x, ops["m12"], ops["c12"], ops["bp"], ops["bpa"], ops["m3_bot"], ops["b3"])

    return (sino_pred[:B].reshape(B, 1, A, D),
            img1[:B].reshape(B, width, width),
            img_pred[:B].reshape(B, 1, width, width))


# ----------------------------------------------------------------------------
# Plain-JAX reference (for correctness check only)
# ----------------------------------------------------------------------------
def testnet_forward_ref(sino, params, bp_matrix, width):
    conv = functools.partial(
        jax.lax.conv_general_dilated,
        window_strides=(1, 1),
        dimension_numbers=("NCHW", "OIHW", "NCHW"),
        precision=jax.lax.Precision.HIGHEST)
    h = conv(sino, params["w1"], padding=((2, 2), (2, 2))) + params["b1"][None, :, None, None]
    sino_pred = conv(h, params["w2"], padding=((2, 2), (2, 2))) + params["b2"][None, :, None, None]
    sino_cat = jnp.concatenate([sino, sino_pred], axis=1)
    B = sino.shape[0]
    img = jnp.dot(sino_cat.reshape(B * 2, -1), bp_matrix,
                  precision=jax.lax.Precision.HIGHEST).reshape(B, 2, width, width)
    img_pred = conv(img, params["w3"], padding=((1, 1), (1, 1))) + params["b3"][None, :, None, None]
    return sino_pred, img[:, 1, ...], img_pred


# ----------------------------------------------------------------------------
# main
# ----------------------------------------------------------------------------
if __name__ == "__main__":
    B = 2
    channels = 4
    width = 16
    det_count = 16
    n_angles = 8

    key = jax.random.PRNGKey(0)
    k_in, k1, k2, k3, k4, k5, k6 = jax.random.split(key, 7)

    # deterministic parameter init (PyTorch-like uniform +-1/sqrt(fan_in))
    def init_conv(kw, kb, cout, cin, k):
        bound = 1.0 / (cin * k * k) ** 0.5
        w = jax.random.uniform(kw, (cout, cin, k, k), jnp.float32, -bound, bound)
        b = jax.random.uniform(kb, (cout,), jnp.float32, -bound, bound)
        return w, b

    w1, b1 = init_conv(k1, k2, channels, 1, 5)        # Conv2d(1 -> channels, k=5, p=2)
    w2, b2 = init_conv(k3, k4, 1, channels, 5)        # Conv2d(channels -> 1, k=5, p=2)
    w3, b3 = init_conv(k5, k6, 1, 2, 3)               # Conv2d(2 -> 1, k=3, p=1)
    params = dict(w1=w1, b1=b1, w2=w2, b2=b2, w3=w3, b3=b3)

    angles = jnp.linspace(0.0, jnp.pi, n_angles, endpoint=False, dtype=jnp.float32)
    ops = build_operators(params, angles, n_angles, det_count, width)

    sino = jax.random.normal(k_in, (B, 1, n_angles, det_count), jnp.float32)

    fwd = jax.jit(functools.partial(testnet_forward, width=width))
    sino_pred, img_cat_ch1, img_pred = fwd(sino, ops)
    jax.block_until_ready((sino_pred, img_cat_ch1, img_pred))

    assert sino_pred.shape == (B, 1, n_angles, det_count)
    assert img_cat_ch1.shape == (B, width, width)
    assert img_pred.shape == (B, 1, width, width)

    # Correctness check against a plain-JAX reference of the same forward pass.
    ref_sp, ref_img1, ref_ip = testnet_forward_ref(sino, params, ops["bp_f32"], width)
    assert jnp.allclose(sino_pred, ref_sp, rtol=5e-2, atol=5e-2), "sino_pred mismatch"
    assert jnp.allclose(img_cat_ch1, ref_img1, rtol=5e-2, atol=5e-2), "img_cat[:,1] mismatch"
    assert jnp.allclose(img_pred, ref_ip, rtol=5e-2, atol=5e-2), "img_pred mismatch"

    print("KERNEL_OK")
</pallas_src>

<mosaic_0001>
module attributes {stable_mosaic.version = 11 : i64} {
  func.func @_testnet_fused_kernel(%arg0: i32, %arg1: memref<8x128xbf16, #tpu.memory_space<vmem>>, %arg2: memref<128x128xbf16, #tpu.memory_space<vmem>>, %arg3: memref<1x128xf32, #tpu.memory_space<vmem>>, %arg4: memref<128x256xbf16, #tpu.memory_space<vmem>>, %arg5: memref<128x256xbf16, #tpu.memory_space<vmem>>, %arg6: memref<256x256xbf16, #tpu.memory_space<vmem>>, %arg7: memref<1x256xf32, #tpu.memory_space<vmem>>, %arg8: memref<8x128xf32, #tpu.memory_space<vmem>>, %arg9: memref<8x256xf32, #tpu.memory_space<vmem>>, %arg10: memref<8x256xf32, #tpu.memory_space<vmem>>) attributes {dimension_semantics = [#tpu.dimension_semantics<arbitrary>], iteration_bounds = array<i64: 1>, scalar_prefetch = 0 : i64, scratch_operands = 0 : i64, tpu.core_type = #tpu.core_type<tc>, window_params = [{pipeline_mode = #tpu.pipeline_mode<synchronous>, transform_indices = @transform_0, window_bounds = array<i64: 8, 128>}, {pipeline_mode = #tpu.pipeline_mode<synchronous>, transform_indices = @transform_1, window_bounds = array<i64: 128, 128>}, {pipeline_mode = #tpu.pipeline_mode<synchronous>, transform_indices = @transform_2, window_bounds = array<i64: 1, 128>}, {pipeline_mode = #tpu.pipeline_mode<synchronous>, transform_indices = @transform_3, window_bounds = array<i64: 128, 256>}, {pipeline_mode = #tpu.pipeline_mode<synchronous>, transform_indices = @transform_4, window_bounds = array<i64: 128, 256>}, {pipeline_mode = #tpu.pipeline_mode<synchronous>, transform_indices = @transform_5, window_bounds = array<i64: 256, 256>}, {pipeline_mode = #tpu.pipeline_mode<synchronous>, transform_indices = @transform_6, window_bounds = array<i64: 1, 256>}, {pipeline_mode = #tpu.pipeline_mode<synchronous>, transform_indices = @transform_7, window_bounds = array<i64: 8, 128>}, {pipeline_mode = #tpu.pipeline_mode<synchronous>, transform_indices = @transform_8, window_bounds = array<i64: 8, 256>}, {pipeline_mode = #tpu.pipeline_mode<synchronous>, transform_indices = @transform_9, window_bounds = array<i64: 8, 256>}]} {
    %c0 = arith.constant 0 : index
    %c0_0 = arith.constant 0 : index
    %0 = vector.load %arg1[%c0, %c0_0] : memref<8x128xbf16, #tpu.memory_space<vmem>>, vector<8x128xbf16>
    %c0_1 = arith.constant 0 : index
    %c0_2 = arith.constant 0 : index
    %1 = vector.load %arg2[%c0_1, %c0_2] : memref<128x128xbf16, #tpu.memory_space<vmem>>, vector<128x128xbf16>
    %cst = arith.constant dense<0.000000e+00> : vector<8x128xf32>
    %2 = tpu.matmul %0, %1, %cst {dimension_numbers = #tpu.dot_dimension_numbers<[1], [0], [0], [1], [0, 0, 1, 1], [], []>} : vector<8x128xbf16>, vector<128x128xbf16>, vector<8x128xf32> -> vector<8x128xf32>
    %c0_3 = arith.constant 0 : index
    %c0_4 = arith.constant 0 : index
    %3 = vector.load %arg3[%c0_3, %c0_4] : memref<1x128xf32, #tpu.memory_space<vmem>>, vector<1x128xf32>
    %4 = vector.broadcast %3 : vector<1x128xf32> to vector<8x128xf32>
    %5 = arith.addf %2, %4 : vector<8x128xf32>
    %c0_5 = arith.constant 0 : index
    %c0_6 = arith.constant 0 : index
    %6 = vector.load %arg8[%c0_5, %c0_6] : memref<8x128xf32, #tpu.memory_space<vmem>>, vector<8x128xf32>
    tpu.vector_store %arg8[%c0_5, %c0_6], %5 {strides = array<i32>} : memref<8x128xf32, #tpu.memory_space<vmem>>, vector<8x128xf32>,
    %7 = arith.truncf %5 : vector<8x128xf32> to vector<8x128xbf16>
    %c0_7 = arith.constant 0 : index
    %c0_8 = arith.constant 0 : index
    %8 = vector.load %arg4[%c0_7, %c0_8] : memref<128x256xbf16, #tpu.memory_space<vmem>>, vector<128x256xbf16>
    %cst_9 = arith.constant dense<0.000000e+00> : vector<8x256xf32>
    %9 = tpu.matmul %7, %8, %cst_9 {dimension_numbers = #tpu.dot_dimension_numbers<[1], [0], [0], [1], [0, 0, 1, 1], [], []>} : vector<8x128xbf16>, vector<128x256xbf16>, vector<8x256xf32> -> vector<8x256xf32>
    %c0_10 = arith.constant 0 : index
    %c0_11 = arith.constant 0 : index
    %10 = vector.load %arg9[%c0_10, %c0_11] : memref<8x256xf32, #tpu.memory_space<vmem>>, vector<8x256xf32>
    tpu.vector_store %arg9[%c0_10, %c0_11], %9 {strides = array<i32>} : memref<8x256xf32, #tpu.memory_space<vmem>>, vector<8x256xf32>,
    %c0_12 = arith.constant 0 : index
    %c0_13 = arith.constant 0 : index
    %11 = vector.load %arg5[%c0_12, %c0_13] : memref<128x256xbf16, #tpu.memory_space<vmem>>, vector<128x256xbf16>
    %cst_14 = arith.constant dense<0.000000e+00> : vector<8x256xf32>
    %12 = tpu.matmul %0, %11, %cst_14 {dimension_numbers = #tpu.dot_dimension_numbers<[1], [0], [0], [1], [0, 0, 1, 1], [], []>} : vector<8x128xbf16>, vector<128x256xbf16>, vector<8x256xf32> -> vector<8x256xf32>
    %13 = arith.truncf %9 : vector<8x256xf32> to vector<8x256xbf16>
    %c0_15 = arith.constant 0 : index
    %c0_16 = arith.constant 0 : index
    %14 = vector.load %arg6[%c0_15, %c0_16] : memref<256x256xbf16, #tpu.memory_space<vmem>>, vector<256x256xbf16>
    %cst_17 = arith.constant dense<0.000000e+00> : vector<8x256xf32>
    %15 = tpu.matmul %13, %14, %cst_17 {dimension_numbers = #tpu.dot_dimension_numbers<[1], [0], [0], [1], [0, 0, 1, 1], [], []>} : vector<8x256xbf16>, vector<256x256xbf16>, vector<8x256xf32> -> vector<8x256xf32>
    %16 = arith.addf %12, %15 : vector<8x256xf32>
    %c0_18 = arith.constant 0 : index
    %c0_19 = arith.constant 0 : index
    %17 = vector.load %arg7[%c0_18, %c0_19] : memref<1x256xf32, #tpu.memory_space<vmem>>, vector<1x256xf32>
    %18 = vector.broadcast %17 : vector<1x256xf32> to vector<8x256xf32>
    %19 = arith.addf %16, %18 : vector<8x256xf32>
    %c0_20 = arith.constant 0 : index
    %c0_21 = arith.constant 0 : index
    %20 = vector.load %arg10[%c0_20, %c0_21] : memref<8x256xf32, #tpu.memory_space<vmem>>, vector<8x256xf32>
    tpu.vector_store %arg10[%c0_20, %c0_21], %19 {strides = array<i32>} : memref<8x256xf32, #tpu.memory_space<vmem>>, vector<8x256xf32>,
    return
  }
  func.func @transform_0(%arg0: i32) -> (i32, i32) {
    %c0_i32 = arith.constant 0 : i32
    %c0_i32_0 = arith.constant 0 : i32
    %c0_i32_1 = arith.constant 0 : i32
    return %c0_i32, %c0_i32_0 : i32, i32
  }
  func.func @transform_1(%arg0: i32) -> (i32, i32) {
    %c0_i32 = arith.constant 0 : i32
    %c0_i32_0 = arith.constant 0 : i32
    %c0_i32_1 = arith.constant 0 : i32
    return %c0_i32, %c0_i32_0 : i32, i32
  }
  func.func @transform_2(%arg0: i32) -> (i32, i32) {
    %c0_i32 = arith.constant 0 : i32
    %c0_i32_0 = arith.constant 0 : i32
    %c0_i32_1 = arith.constant 0 : i32
    return %c0_i32, %c0_i32_0 : i32, i32
  }
  func.func @transform_3(%arg0: i32) -> (i32, i32) {
    %c0_i32 = arith.constant 0 : i32
    %c0_i32_0 = arith.constant 0 : i32
    %c0_i32_1 = arith.constant 0 : i32
    return %c0_i32, %c0_i32_0 : i32, i32
  }
  func.func @transform_4(%arg0: i32) -> (i32, i32) {
    %c0_i32 = arith.constant 0 : i32
    %c0_i32_0 = arith.constant 0 : i32
    %c0_i32_1 = arith.constant 0 : i32
    return %c0_i32, %c0_i32_0 : i32, i32
  }
  func.func @transform_5(%arg0: i32) -> (i32, i32) {
    %c0_i32 = arith.constant 0 : i32
    %c0_i32_0 = arith.constant 0 : i32
    %c0_i32_1 = arith.constant 0 : i32
    return %c0_i32, %c0_i32_0 : i32, i32
  }
  func.func @transform_6(%arg0: i32) -> (i32, i32) {
    %c0_i32 = arith.constant 0 : i32
    %c0_i32_0 = arith.constant 0 : i32
    %c0_i32_1 = arith.constant 0 : i32
    return %c0_i32, %c0_i32_0 : i32, i32
  }
  func.func @transform_7(%arg0: i32) -> (i32, i32) {
    %c0_i32 = arith.constant 0 : i32
    %c0_i32_0 = arith.constant 0 : i32
    %c0_i32_1 = arith.constant 0 : i32
    return %c0_i32, %c0_i32_0 : i32, i32
  }
  func.func @transform_8(%arg0: i32) -> (i32, i32) {
    %c0_i32 = arith.constant 0 : i32
    %c0_i32_0 = arith.constant 0 : i32
    %c0_i32_1 = arith.constant 0 : i32
    return %c0_i32, %c0_i32_0 : i32, i32
  }
  func.func @transform_9(%arg0: i32) -> (i32, i32) {
    %c0_i32 = arith.constant 0 : i32
    %c0_i32_0 = arith.constant 0 : i32
    %c0_i32_1 = arith.constant 0 : i32
    return %c0_i32, %c0_i32_0 : i32, i32
  }
}

</mosaic_0001>

<llo_original>
// kernel: testnet_forward.1
$region0: #{testnet_forward.1}
  #allocation0 [shape = 'u32[]', space=smem, size = 0x4, offset = 0x4, fixed_abs, tag = 'smem constant byte address 0x4 - core index']
  #allocation1 [shape = 'u32[144,128]{1,0:T(1,128)}', space=vmem, size = 0x12000, scoped, tag = 'internal scratch']
  %s0 = inlined_call_operand.vmem [shape: bf16[8,128], index: 0, kind: input, shape index: {}]
  %s1 = inlined_call_operand.hbm [shape: bf16[128,128], index: 1, kind: input, shape index: {}]
  %s2 = inlined_call_operand.vmem [shape: f32[1,128], index: 2, kind: input, shape index: {}]
  %s3 = inlined_call_operand.hbm [shape: bf16[128,256], index: 3, kind: input, shape index: {}]
  %s4 = inlined_call_operand.hbm [shape: bf16[128,256], index: 4, kind: input, shape index: {}]
  %s5 = inlined_call_operand.hbm [shape: bf16[256,256], index: 5, kind: input, shape index: {}]
  %s6 = inlined_call_operand.vmem [shape: f32[1,256], index: 6, kind: input, shape index: {}]
  %s7 = inlined_call_operand.vmem [shape: f32[8,128], index: 7, kind: output, shape index: {0}]
  %s8 = inlined_call_operand.vmem [shape: f32[8,256], index: 8, kind: output, shape index: {1}]
  %s9 = inlined_call_operand.vmem [shape: f32[8,256], index: 9, kind: output, shape index: {2}]
  %10 = xla_tuple %s7, %s8, %s9
  %s11 = sld [smem:[#allocation0]]
  $region70: #{testnet_forward.1} parent=0
    _
  %s13 = ssub.s32 1, %s11
  %s14 = scalar_select 0, %s13, %s11
  $region1: #{testnet_forward.1} parent=0
    #allocation2 [shape = 'u8[32768]{0}', space=vmem, size = 0x8000, scoped, tag = 'input window, operand 1, single buffered']
    #allocation3 [shape = 's32[1]{0}', space=sflag, size = 0x4, scoped, tag = 'scoped memory for testnet_forward.1']
    #allocation4 [shape = 'u8[65536]{0}', space=vmem, size = 0x10000, scoped, tag = 'input window, operand 3, single buffered']
    #allocation5 [shape = 's32[1]{0}', space=sflag, size = 0x4, scoped, tag = 'scoped memory for testnet_forward.1']
    #allocation6 [shape = 'u8[65536]{0}', space=vmem, size = 0x10000, scoped, tag = 'input window, operand 4, single buffered']
    #allocation7 [shape = 'u8[131072]{0}', space=vmem, size = 0x20000, scoped, tag = 'input window, operand 5, single buffered']
    #allocation8 [shape = 's32[1]{0}', space=sflag, size = 0x4, scoped, tag = 'scoped memory for testnet_forward.1']
    %15 = vsyncpa [#allocation3], 0
    %16 = vsyncpa [#allocation5], 0
    %17 = vsyncpa [#allocation8], 0
    // Predicated region
    $region2: #{testnet_forward.1} parent=1 // pred_check
      _
    $region3: #{testnet_forward.1} parent=1 // pred_check_branch
      %19 = sbr.rel (0) target = $region5
    $region4: #{testnet_forward.1} parent=1 // pred_region
      _
    $region5: #{testnet_forward.1} parent=1 // pred_fallthru
      _
    // Predicated region
    $region6: #{testnet_forward.1} parent=1 // pred_check
      _
    $region7: #{testnet_forward.1} parent=1 // pred_check_branch
      %21 = sbr.rel (0) target = $region9
    $region8: #{testnet_forward.1} parent=1 // pred_region
      %s23 = ssub.s32 1024, 1024
      %24 = vsyncadd [#allocation3], %s23
      %s25 = sshll.u32 [#allocation2], 4
      %s26 = int_to_ptr.vmem [resolvable:$true] %s25
      %31 = dma.hbm_to_vmem [thread:$0]  %s1, 1024, %s26, [#allocation3], 64, 64, 4
    $region9: #{testnet_forward.1} parent=1 // pred_fallthru
      _
    // Predicated region
    $region10: #{testnet_forward.1} parent=1 // pred_check
      _
    $region11: #{testnet_forward.1} parent=1 // pred_check_branch
      %33 = sbr.rel (0) target = $region13
    $region12: #{testnet_forward.1} parent=1 // pred_region
      _
    $region13: #{testnet_forward.1} parent=1 // pred_fallthru
      _
    // Predicated region
    $region14: #{testnet_forward.1} parent=1 // pred_check
      _
    $region15: #{testnet_forward.1} parent=1 // pred_check_branch
      %35 = sbr.rel (0) target = $region17
    $region16: #{testnet_forward.1} parent=1 // pred_region
      %s37 = ssub.s32 2048, 2048
      %38 = vsyncadd [#allocation5], %s37
      %s39 = sshll.u32 [#allocation4], 4
      %s40 = int_to_ptr.vmem [resolvable:$true] %s39
      %45 = dma.hbm_to_vmem [thread:$0]  %s3, 2048, %s40, [#allocation5], 128, 128, 8
    $region17: #{testnet_forward.1} parent=1 // pred_fallthru
      _
    // Predicated region
    $region18: #{testnet_forward.1} parent=1 // pred_check
      _
    $region19: #{testnet_forward.1} parent=1 // pred_check_branch
      %47 = sbr.rel (0) target = $region21
    $region20: #{testnet_forward.1} parent=1 // pred_region
      %s49 = ssub.s32 2048, 2048
      %50 = vsyncadd [#allocation5], %s49
      %s51 = sshll.u32 [#allocation6], 4
      %s52 = int_to_ptr.vmem [resolvable:$true] %s51
      %57 = dma.hbm_to_vmem [thread:$0]  %s4, 2048, %s52, [#allocation5], 128, 128, 8
    $region21: #{testnet_forward.1} parent=1 // pred_fallthru
      _
    // Predicated region
    $region22: #{testnet_forward.1} parent=1 // pred_check
      _
    $region23: #{testnet_forward.1} parent=1 // pred_check_branch
      %59 = sbr.rel (0) target = $region25
    $region24: #{testnet_forward.1} parent=1 // pred_region
      %s61 = ssub.s32 4096, 4096
      %62 = vsyncadd [#allocation8], %s61
      %s63 = sshll.u32 [#allocation7], 4
      %s64 = int_to_ptr.vmem [resolvable:$true] %s63
      %69 = dma.hbm_to_vmem [thread:$0]  %s5, 4096, %s64, [#allocation8], 128, 128, 8
    $region25: #{testnet_forward.1} parent=1 // pred_fallthru
      _
    // Predicated region
    $region26: #{testnet_forward.1} parent=1 // pred_check
      _
    $region27: #{testnet_forward.1} parent=1 // pred_check_branch
      %71 = sbr.rel (0) target = $region29
    $region28: #{testnet_forward.1} parent=1 // pred_region
      _
    $region29: #{testnet_forward.1} parent=1 // pred_fallthru
      _
    // Predicated region
    $region30: #{testnet_forward.1} parent=1 // pred_check
      _
    $region31: #{testnet_forward.1} parent=1 // pred_check_branch
      %73 = sbr.rel (0) target = $region33
    $region32: #{testnet_forward.1} parent=1 // pred_region
      %74 = dma.done [#allocation3], 1024
    $region33: #{testnet_forward.1} parent=1 // pred_fallthru
      _
    // Predicated region
    $region34: #{testnet_forward.1} parent=1 // pred_check
      _
    $region35: #{testnet_forward.1} parent=1 // pred_check_branch
      %76 = sbr.rel (0) target = $region37
    $region36: #{testnet_forward.1} parent=1 // pred_region
      %77 = dma.done [#allocation5], 2048
    $region37: #{testnet_forward.1} parent=1 // pred_fallthru
      _
    // Predicated region
    $region38: #{testnet_forward.1} parent=1 // pred_check
      _
    $region39: #{testnet_forward.1} parent=1 // pred_check_branch
      %79 = sbr.rel (0) target = $region41
    $region40: #{testnet_forward.1} parent=1 // pred_region
      %80 = dma.done [#allocation5], 2048
    $region41: #{testnet_forward.1} parent=1 // pred_fallthru
      _
    // Predicated region
    $region42: #{testnet_forward.1} parent=1 // pred_check
      _
    $region43: #{testnet_forward.1} parent=1 // pred_check_branch
      %82 = sbr.rel (0) target = $region45
    $region44: #{testnet_forward.1} parent=1 // pred_region
      %83 = dma.done [#allocation8], 4096
    $region45: #{testnet_forward.1} parent=1 // pred_fallthru
      _
    %v85 = vld [vmem:[%s0] sm:$0xf]
    %v86 = vld [vmem:[#allocation2] sm:$0xf]
    %v87 = vld [vmem:[#allocation2 + $0x4] sm:$0xf]
    %v88 = vld [vmem:[#allocation2 + $0x8] sm:$0xf]
    %v89 = vld [vmem:[#allocation2 + $0xc] sm:$0xf]
    %v90 = vld [vmem:[#allocation2 + $0x10] sm:$0xf]
    %v91 = vld [vmem:[#allocation2 + $0x14] sm:$0xf]
    %v92 = vld [vmem:[#allocation2 + $0x18] sm:$0xf]
    %v93 = vld [vmem:[#allocation2 + $0x1c] sm:$0xf]
    %v94 = vld [vmem:[#allocation2 + $0x20] sm:$0xf]
    %v95 = vld [vmem:[#allocation2 + $0x24] sm:$0xf]
    %v96 = vld [vmem:[#allocation2 + $0x28] sm:$0xf]
    %v97 = vld [vmem:[#allocation2 + $0x2c] sm:$0xf]
    %v98 = vld [vmem:[#allocation2 + $0x30] sm:$0xf]
    %v99 = vld [vmem:[#allocation2 + $0x34] sm:$0xf]
    %v100 = vld [vmem:[#allocation2 + $0x38] sm:$0xf]
    %v101 = vld [vmem:[#allocation2 + $0x3c] sm:$0xf]
    %v102 = vld [vmem:[%s2] sm:$0x1]
    %v104 = vlaneseq
    %v105 = vshrl.u32 %v104, 7
    %v106 = vsub.s32 0, %v105
    %v107 = vrot.slane %v102, %v106
    %v125 = vunpack.c.l.b16 %v86
    %v126 = vunpack.c.l.b16 %v87
    %v127 = vunpack.c.l.b16 %v88
    %v128 = vunpack.c.l.b16 %v89
    %v129 = vunpack.c.l.b16 %v90
    %v130 = vunpack.c.l.b16 %v91
    %v131 = vunpack.c.l.b16 %v92
    %v132 = vunpack.c.l.b16 %v93
    %v133 = vunpack.c.l.b16 %v94
    %v134 = vunpack.c.l.b16 %v95
    %v135 = vunpack.c.l.b16 %v96
    %v136 = vunpack.c.l.b16 %v97
    %v137 = vunpack.c.l.b16 %v98
    %v138 = vunpack.c.l.b16 %v99
    %v139 = vunpack.c.l.b16 %v100
    %v140 = vunpack.c.l.b16 %v101
    %v141 = vpack.c.b16 %v126, %v125
    %v142 = vpack.c.b16 %v128, %v127
    %v143 = vpack.c.b16 %v130, %v129
    %v144 = vpack.c.b16 %v132, %v131
    %v145 = vpack.c.b16 %v134, %v133
    %v146 = vpack.c.b16 %v136, %v135
    %v147 = vpack.c.b16 %v138, %v137
    %v148 = vpack.c.b16 %v140, %v139
    %157 = vmatprep.subr.bf16.mxu0 0
    %158 = vmatpush1.bf16.msra.mxu0 %v148
    %159 = vmatprep.subr.bf16.mxu0 0
    %160 = vmatpush1.bf16.msra.mxu0 %v147
    %161 = vmatprep.subr.bf16.mxu0 0
    %162 = vmatpush1.bf16.msra.mxu0 %v146
    %163 = vmatprep.subr.bf16.mxu0 0
    %164 = vmatpush1.bf16.msra.mxu0 %v145
    %165 = vmatprep.subr.bf16.mxu0 0
    %166 = vmatpush1.bf16.msra.mxu0 %v144
    %167 = vmatprep.subr.bf16.mxu0 0
    %168 = vmatpush1.bf16.msra.mxu0 %v143
    %169 = vmatprep.subr.bf16.mxu0 0
    %170 = vmatpush1.bf16.msra.mxu0 %v142
    %171 = vmatprep.subr.bf16.mxu0 0
    %172 = vmatpush1.bf16.msra.mxu0 %v141
    %173 = vmatprep.subr.bf16.mxu0 0
    %174 = vmatpush2.bf16.msra.mxu0 0
    %175 = vmatprep.subr.bf16.mxu0 0
    %176 = vmatpush2.bf16.msra.mxu0 0
    %177 = vmatprep.subr.bf16.mxu0 0
    %178 = vmatpush2.bf16.msra.mxu0 0
    %179 = vmatprep.subr.bf16.mxu0 0
    %180 = vmatpush2.bf16.msra.mxu0 0
    %181 = vmatprep.subr.bf16.mxu0 0
    %182 = vmatpush2.bf16.msra.mxu0 0
    %183 = vmatprep.subr.bf16.mxu0 0
    %184 = vmatpush2.bf16.msra.mxu0 0
    %185 = vmatprep.subr.bf16.mxu0 0
    %186 = vmatpush2.bf16.msra.mxu0 0
    %187 = vmatprep.subr.bf16.mxu0 0
    %188 = vmatpush2.bf16.msra.mxu0 0
    %189 = vmatprep.mubr.bf16.mxu0 0
    %190 = vmatmul.mubr.bf16.gmra.mxu0 %v85
    %v191 = vpop.f32.mrf.mxu0
    %v192 = vadd.f32 %v107, %v191
    %v193 = vpop.f32.mrf.mxu0
    %v194 = vpop.f32.mrf.mxu0
    %v195 = vpop.f32.mrf.mxu0
    %196 = vdwg.mxu0
    %197 = vst [vmem:[%s7] sm:$0xff] %v192
    %v198 = vpack.c.bf16 %v192, %v192
    %v199 = vld [vmem:[#allocation4] sm:$0xff]
    %v200 = vld [vmem:[#allocation4 + $0x8] sm:$0xff]
    %v201 = vld [vmem:[#allocation4 + $0x10] sm:$0xff]
    %v202 = vld [vmem:[#allocation4 + $0x18] sm:$0xff]
    %v203 = vld [vmem:[#allocation4 + $0x20] sm:$0xff]
    %v204 = vld [vmem:[#allocation4 + $0x28] sm:$0xff]
    %v205 = vld [vmem:[#allocation4 + $0x30] sm:$0xff]
    %v206 = vld [vmem:[#allocation4 + $0x38] sm:$0xff]
    %v207 = vld [vmem:[#allocation4 + $0x40] sm:$0xff]
    %v208 = vld [vmem:[#allocation4 + $0x48] sm:$0xff]
    %v209 = vld [vmem:[#allocation4 + $0x50] sm:$0xff]
    %v210 = vld [vmem:[#allocation4 + $0x58] sm:$0xff]
    %v211 = vld [vmem:[#allocation4 + $0x60] sm:$0xff]
    %v212 = vld [vmem:[#allocation4 + $0x68] sm:$0xff]
    %v213 = vld [vmem:[#allocation4 + $0x70] sm:$0xff]
    %v214 = vld [vmem:[#allocation4 + $0x78] sm:$0xff]
    %v231 = vunpack.c.l.b16 %v199
    %v232 = vunpack.c.h.b16 %v199
    %v233 = vunpack.c.l.b16 %v200
    %v234 = vunpack.c.h.b16 %v200
    %v235 = vunpack.c.l.b16 %v201
    %v236 = vunpack.c.h.b16 %v201
    %v237 = vunpack.c.l.b16 %v202
    %v238 = vunpack.c.h.b16 %v202
    %v239 = vunpack.c.l.b16 %v203
    %v240 = vunpack.c.h.b16 %v203
    %v241 = vunpack.c.l.b16 %v204
    %v242 = vunpack.c.h.b16 %v204
    %v243 = vunpack.c.l.b16 %v205
    %v244 = vunpack.c.h.b16 %v205
    %v245 = vunpack.c.l.b16 %v206
    %v246 = vunpack.c.h.b16 %v206
    %v247 = vunpack.c.l.b16 %v207
    %v248 = vunpack.c.h.b16 %v207
    %v249 = vunpack.c.l.b16 %v208
    %v250 = vunpack.c.h.b16 %v208
    %v251 = vunpack.c.l.b16 %v209
    %v252 = vunpack.c.h.b16 %v209
    %v253 = vunpack.c.l.b16 %v210
    %v254 = vunpack.c.h.b16 %v210
    %v255 = vunpack.c.l.b16 %v211
    %v256 = vunpack.c.h.b16 %v211
    %v257 = vunpack.c.l.b16 %v212
    %v258 = vunpack.c.h.b16 %v212
    %v259 = vunpack.c.l.b16 %v213
    %v260 = vunpack.c.h.b16 %v213
    %v261 = vunpack.c.l.b16 %v214
    %v262 = vunpack.c.h.b16 %v214
    %v263 = vpack.c.b16 %v233, %v231
    %v264 = vpack.c.b16 %v234, %v232
    %v265 = vpack.c.b16 %v237, %v235
    %v266 = vpack.c.b16 %v238, %v236
    %v267 = vpack.c.b16 %v241, %v239
    %v268 = vpack.c.b16 %v242, %v240
    %v269 = vpack.c.b16 %v245, %v243
    %v270 = vpack.c.b16 %v246, %v244
    %v271 = vpack.c.b16 %v249, %v247
    %v272 = vpack.c.b16 %v250, %v248
    %v273 = vpack.c.b16 %v253, %v251
    %v274 = vpack.c.b16 %v254, %v252
    %v275 = vpack.c.b16 %v257, %v255
    %v276 = vpack.c.b16 %v258, %v256
    %v277 = vpack.c.b16 %v261, %v259
    %v278 = vpack.c.b16 %v262, %v260
    %295 = vmatprep.subr.bf16.mxu0 %v278
    %296 = vmatpush1.bf16.msra.mxu0 %v277
    %297 = vmatprep.subr.bf16.mxu0 %v276
    %298 = vmatpush1.bf16.msra.mxu0 %v275
    %299 = vmatprep.subr.bf16.mxu0 %v274
    %300 = vmatpush1.bf16.msra.mxu0 %v273
    %301 = vmatprep.subr.bf16.mxu0 %v272
    %302 = vmatpush1.bf16.msra.mxu0 %v271
    %303 = vmatprep.subr.bf16.mxu0 %v270
    %304 = vmatpush1.bf16.msra.mxu0 %v269
    %305 = vmatprep.subr.bf16.mxu0 %v268
    %306 = vmatpush1.bf16.msra.mxu0 %v267
    %307 = vmatprep.subr.bf16.mxu0 %v266
    %308 = vmatpush1.bf16.msra.mxu0 %v265
    %309 = vmatprep.subr.bf16.mxu0 %v264
    %310 = vmatpush1.bf16.msra.mxu0 %v263
    %311 = vmatprep.subr.bf16.mxu0 0
    %312 = vmatpush2.bf16.msra.mxu0 0
    %313 = vmatprep.subr.bf16.mxu0 0
    %314 = vmatpush2.bf16.msra.mxu0 0
    %315 = vmatprep.subr.bf16.mxu0 0
    %316 = vmatpush2.bf16.msra.mxu0 0
    %317 = vmatprep.subr.bf16.mxu0 0
    %318 = vmatpush2.bf16.msra.mxu0 0
    %319 = vmatprep.subr.bf16.mxu0 0
    %320 = vmatpush2.bf16.msra.mxu0 0
    %321 = vmatprep.subr.bf16.mxu0 0
    %322 = vmatpush2.bf16.msra.mxu0 0
    %323 = vmatprep.subr.bf16.mxu0 0
    %324 = vmatpush2.bf16.msra.mxu0 0
    %325 = vmatprep.subr.bf16.mxu0 0
    %326 = vmatpush2.bf16.msra.mxu0 0
    %327 = vmatprep.mubr.bf16.mxu0 0
    %328 = vmatmul.mubr.bf16.gmra.mxu0 %v198
    %v329 = vpop.f32.mrf.mxu0
    %v330 = vadd.f32 0.0, %v329
    %v331 = vpop.f32.mrf.mxu0
    %v332 = vadd.f32 0.0, %v331
    %v333 = vpop.f32.mrf.mxu0
    %v334 = vpop.f32.mrf.mxu0
    %335 = vdwg.mxu0
    %336 = vst [vmem:[%s8] sm:$0xff] %v330
    %337 = vst [vmem:[%s8 + $0x8] sm:$0xff] %v332
    %v338 = vld [vmem:[#allocation6] sm:$0xff]
    %v339 = vld [vmem:[#allocation6 + $0x8] sm:$0xff]
    %v340 = vld [vmem:[#allocation6 + $0x10] sm:$0xff]
    %v341 = vld [vmem:[#allocation6 + $0x18] sm:$0xff]
    %v342 = vld [vmem:[#allocation6 + $0x20] sm:$0xff]
    %v343 = vld [vmem:[#allocation6 + $0x28] sm:$0xff]
    %v344 = vld [vmem:[#allocation6 + $0x30] sm:$0xff]
    %v345 = vld [vmem:[#allocation6 + $0x38] sm:$0xff]
    %v346 = vld [vmem:[#allocation6 + $0x40] sm:$0xff]
    %v347 = vld [vmem:[#allocation6 + $0x48] sm:$0xff]
    %v348 = vld [vmem:[#allocation6 + $0x50] sm:$0xff]
    %v349 = vld [vmem:[#allocation6 + $0x58] sm:$0xff]
    %v350 = vld [vmem:[#allocation6 + $0x60] sm:$0xff]
    %v351 = vld [vmem:[#allocation6 + $0x68] sm:$0xff]
    %v352 = vld [vmem:[#allocation6 + $0x70] sm:$0xff]
    %v353 = vld [vmem:[#allocation6 + $0x78] sm:$0xff]
    %v354 = vpack.c.bf16 %v330, %v330
    %v355 = vpack.c.bf16 %v332, %v332
    %v356 = vld [vmem:[#allocation7] sm:$0xff]
    %v357 = vld [vmem:[#allocation7 + $0x8] sm:$0xff]
    %v358 = vld [vmem:[#allocation7 + $0x10] sm:$0xff]
    %v359 = vld [vmem:[#allocation7 + $0x18] sm:$0xff]
    %v360 = vld [vmem:[#allocation7 + $0x20] sm:$0xff]
    %v361 = vld [vmem:[#allocation7 + $0x28] sm:$0xff]
    %v362 = vld [vmem:[#allocation7 + $0x30] sm:$0xff]
    %v363 = vld [vmem:[#allocation7 + $0x38] sm:$0xff]
    %v364 = vld [vmem:[#allocation7 + $0x40] sm:$0xff]
    %v365 = vld [vmem:[#allocation7 + $0x48] sm:$0xff]
    %v366 = vld [vmem:[#allocation7 + $0x50] sm:$0xff]
    %v367 = vld [vmem:[#allocation7 + $0x58] sm:$0xff]
    %v368 = vld [vmem:[#allocation7 + $0x60] sm:$0xff]
    %v369 = vld [vmem:[#allocation7 + $0x68] sm:$0xff]
    %v370 = vld [vmem:[#allocation7 + $0x70] sm:$0xff]
    %v371 = vld [vmem:[#allocation7 + $0x78] sm:$0xff]
    %v372 = vld [vmem:[#allocation7 + $0x80] sm:$0xff]
    %v373 = vld [vmem:[#allocation7 + $0x88] sm:$0xff]
    %v374 = vld [vmem:[#allocation7 + $0x90] sm:$0xff]
    %v375 = vld [vmem:[#allocation7 + $0x98] sm:$0xff]
    %v376 = vld [vmem:[#allocation7 + $0xa0] sm:$0xff]
    %v377 = vld [vmem:[#allocation7 + $0xa8] sm:$0xff]
    %v378 = vld [vmem:[#allocation7 + $0xb0] sm:$0xff]
    %v379 = vld [vmem:[#allocation7 + $0xb8] sm:$0xff]
    %v380 = vld [vmem:[#allocation7 + $0xc0] sm:$0xff]
    %v381 = vld [vmem:[#allocation7 + $0xc8] sm:$0xff]
    %v382 = vld [vmem:[#allocation7 + $0xd0] sm:$0xff]
    %v383 = vld [vmem:[#allocation7 + $0xd8] sm:$0xff]
    %v384 = vld [vmem:[#allocation7 + $0xe0] sm:$0xff]
    %v385 = vld [vmem:[#allocation7 + $0xe8] sm:$0xff]
    %v386 = vld [vmem:[#allocation7 + $0xf0] sm:$0xff]
    %v387 = vld [vmem:[#allocation7 + $0xf8] sm:$0xff]
    %v420 = vunpack.c.l.b16 %v356
    %v421 = vunpack.c.h.b16 %v356
    %v422 = vunpack.c.l.b16 %v357
    %v423 = vunpack.c.h.b16 %v357
    %v424 = vunpack.c.l.b16 %v358
    %v425 = vunpack.c.h.b16 %v358
    %v426 = vunpack.c.l.b16 %v359
    %v427 = vunpack.c.h.b16 %v359
    %v428 = vunpack.c.l.b16 %v360
    %v429 = vunpack.c.h.b16 %v360
    %v430 = vunpack.c.l.b16 %v361
    %v431 = vunpack.c.h.b16 %v361
    %v432 = vunpack.c.l.b16 %v362
    %v433 = vunpack.c.h.b16 %v362
    %v434 = vunpack.c.l.b16 %v363
    %v435 = vunpack.c.h.b16 %v363
    %v436 = vunpack.c.l.b16 %v364
    %v437 = vunpack.c.h.b16 %v364
    %v438 = vunpack.c.l.b16 %v365
    %v439 = vunpack.c.h.b16 %v365
    %v440 = vunpack.c.l.b16 %v366
    %v441 = vunpack.c.h.b16 %v366
    %v442 = vunpack.c.l.b16 %v367
    %v443 = vunpack.c.h.b16 %v367
    %v444 = vunpack.c.l.b16 %v368
    %v445 = vunpack.c.h.b16 %v368
    %v446 = vunpack.c.l.b16 %v369
    %v447 = vunpack.c.h.b16 %v369
    %v448 = vunpack.c.l.b16 %v370
    %v449 = vunpack.c.h.b16 %v370
    %v450 = vunpack.c.l.b16 %v371
    %v451 = vunpack.c.h.b16 %v371
    %v452 = vunpack.c.l.b16 %v372
    %v453 = vunpack.c.h.b16 %v372
    %v454 = vunpack.c.l.b16 %v373
    %v455 = vunpack.c.h.b16 %v373
    %v456 = vunpack.c.l.b16 %v374
    %v457 = vunpack.c.h.b16 %v374
    %v458 = vunpack.c.l.b16 %v375
    %v459 = vunpack.c.h.b16 %v375
    %v460 = vunpack.c.l.b16 %v376
    %v461 = vunpack.c.h.b16 %v376
    %v462 = vunpack.c.l.b16 %v377
    %v463 = vunpack.c.h.b16 %v377
    %v464 = vunpack.c.l.b16 %v378
    %v465 = vunpack.c.h.b16 %v378
    %v466 = vunpack.c.l.b16 %v379
    %v467 = vunpack.c.h.b16 %v379
    %v468 = vunpack.c.l.b16 %v380
    %v469 = vunpack.c.h.b16 %v380
    %v470 = vunpack.c.l.b16 %v381
    %v471 = vunpack.c.h.b16 %v381
    %v472 = vunpack.c.l.b16 %v382
    %v473 = vunpack.c.h.b16 %v382
    %v474 = vunpack.c.l.b16 %v383
    %v475 = vunpack.c.h.b16 %v383
    %v476 = vunpack.c.l.b16 %v384
    %v477 = vunpack.c.h.b16 %v384
    %v478 = vunpack.c.l.b16 %v385
    %v479 = vunpack.c.h.b16 %v385
    %v480 = vunpack.c.l.b16 %v386
    %v481 = vunpack.c.h.b16 %v386
    %v482 = vunpack.c.l.b16 %v387
    %v483 = vunpack.c.h.b16 %v387
    %v484 = vpack.c.b16 %v422, %v420
    %v485 = vpack.c.b16 %v423, %v421
    %v486 = vpack.c.b16 %v426, %v424
    %v487 = vpack.c.b16 %v427, %v425
    %v488 = vpack.c.b16 %v430, %v428
    %v489 = vpack.c.b16 %v431, %v429
    %v490 = vpack.c.b16 %v434, %v432
    %v491 = vpack.c.b16 %v435, %v433
    %v492 = vpack.c.b16 %v438, %v436
    %v493 = vpack.c.b16 %v439, %v437
    %v494 = vpack.c.b16 %v442, %v440
    %v495 = vpack.c.b16 %v443, %v441
    %v496 = vpack.c.b16 %v446, %v444
    %v497 = vpack.c.b16 %v447, %v445
    %v498 = vpack.c.b16 %v450, %v448
    %v499 = vpack.c.b16 %v451, %v449
    %v500 = vpack.c.b16 %v454, %v452
    %v501 = vpack.c.b16 %v455, %v453
    %v502 = vpack.c.b16 %v458, %v456
    %v503 = vpack.c.b16 %v459, %v457
    %v504 = vpack.c.b16 %v462, %v460
    %v505 = vpack.c.b16 %v463, %v461
    %v506 = vpack.c.b16 %v466, %v464
    %v507 = vpack.c.b16 %v467, %v465
    %v508 = vpack.c.b16 %v470, %v468
    %v509 = vpack.c.b16 %v471, %v469
    %v510 = vpack.c.b16 %v474, %v472
    %v511 = vpack.c.b16 %v475, %v473
    %v512 = vpack.c.b16 %v478, %v476
    %v513 = vpack.c.b16 %v479, %v477
    %v514 = vpack.c.b16 %v482, %v480
    %v515 = vpack.c.b16 %v483, %v481
    %548 = vmatprep.subr.bf16.mxu0 %v499
    %549 = vmatpush1.bf16.msra.mxu0 %v498
    %550 = vmatprep.subr.bf16.mxu0 %v497
    %551 = vmatpush1.bf16.msra.mxu0 %v496
    %552 = vmatprep.subr.bf16.mxu0 %v495
    %553 = vmatpush1.bf16.msra.mxu0 %v494
    %554 = vmatprep.subr.bf16.mxu0 %v493
    %555 = vmatpush1.bf16.msra.mxu0 %v492
    %556 = vmatprep.subr.bf16.mxu0 %v491
    %557 = vmatpush1.bf16.msra.mxu0 %v490
    %558 = vmatprep.subr.bf16.mxu0 %v489
    %559 = vmatpush1.bf16.msra.mxu0 %v488
    %560 = vmatprep.subr.bf16.mxu0 %v487
    %561 = vmatpush1.bf16.msra.mxu0 %v486
    %562 = vmatprep.subr.bf16.mxu0 %v485
    %563 = vmatpush1.bf16.msra.mxu0 %v484
    %564 = vmatprep.subr.bf16.mxu0 %v515
    %565 = vmatpush2.bf16.msra.mxu0 %v514
    %566 = vmatprep.subr.bf16.mxu0 %v513
    %567 = vmatpush2.bf16.msra.mxu0 %v512
    %568 = vmatprep.subr.bf16.mxu0 %v511
    %569 = vmatpush2.bf16.msra.mxu0 %v510
    %570 = vmatprep.subr.bf16.mxu0 %v509
    %571 = vmatpush2.bf16.msra.mxu0 %v508
    %572 = vmatprep.subr.bf16.mxu0 %v507
    %573 = vmatpush2.bf16.msra.mxu0 %v506
    %574 = vmatprep.subr.bf16.mxu0 %v505
    %575 = vmatpush2.bf16.msra.mxu0 %v504
    %576 = vmatprep.subr.bf16.mxu0 %v503
    %577 = vmatpush2.bf16.msra.mxu0 %v502
    %578 = vmatprep.subr.bf16.mxu0 %v501
    %579 = vmatpush2.bf16.msra.mxu0 %v500
    %580 = vmatprep.mubr.bf16.mxu0 %v355
    %581 = vmatmul.mubr.bf16.gmra.mxu0 %v354
    %v582 = vpop.f32.mrf.mxu0
    %v583 = vadd.f32 0.0, %v582
    %v584 = vpop.f32.mrf.mxu0
    %v585 = vadd.f32 0.0, %v584
    %v586 = vpop.f32.mrf.mxu0
    %v587 = vpop.f32.mrf.mxu0
    %588 = vdwg.mxu0
    %v605 = vunpack.c.l.b16 %v338
    %v606 = vunpack.c.h.b16 %v338
    %v607 = vunpack.c.l.b16 %v339
    %v608 = vunpack.c.h.b16 %v339
    %v609 = vunpack.c.l.b16 %v340
    %v610 = vunpack.c.h.b16 %v340
    %v611 = vunpack.c.l.b16 %v341
    %v612 = vunpack.c.h.b16 %v341
    %v613 = vunpack.c.l.b16 %v342
    %v614 = vunpack.c.h.b16 %v342
    %v615 = vunpack.c.l.b16 %v343
    %v616 = vunpack.c.h.b16 %v343
    %v617 = vunpack.c.l.b16 %v344
    %v618 = vunpack.c.h.b16 %v344
    %v619 = vunpack.c.l.b16 %v345
    %v620 = vunpack.c.h.b16 %v345
    %v621 = vunpack.c.l.b16 %v346
    %v622 = vunpack.c.h.b16 %v346
    %v623 = vunpack.c.l.b16 %v347
    %v624 = vunpack.c.h.b16 %v347
    %v625 = vunpack.c.l.b16 %v348
    %v626 = vunpack.c.h.b16 %v348
    %v627 = vunpack.c.l.b16 %v349
    %v628 = vunpack.c.h.b16 %v349
    %v629 = vunpack.c.l.b16 %v350
    %v630 = vunpack.c.h.b16 %v350
    %v631 = vunpack.c.l.b16 %v351
    %v632 = vunpack.c.h.b16 %v351
    %v633 = vunpack.c.l.b16 %v352
    %v634 = vunpack.c.h.b16 %v352
    %v635 = vunpack.c.l.b16 %v353
    %v636 = vunpack.c.h.b16 %v353
    %v637 = vpack.c.b16 %v607, %v605
    %v638 = vpack.c.b16 %v608, %v606
    %v639 = vpack.c.b16 %v611, %v609
    %v640 = vpack.c.b16 %v612, %v610
    %v641 = vpack.c.b16 %v615, %v613
    %v642 = vpack.c.b16 %v616, %v614
    %v643 = vpack.c.b16 %v619, %v617
    %v644 = vpack.c.b16 %v620, %v618
    %v645 = vpack.c.b16 %v623, %v621
    %v646 = vpack.c.b16 %v624, %v622
    %v647 = vpack.c.b16 %v627, %v625
    %v648 = vpack.c.b16 %v628, %v626
    %v649 = vpack.c.b16 %v631, %v629
    %v650 = vpack.c.b16 %v632, %v630
    %v651 = vpack.c.b16 %v635, %v633
    %v652 = vpack.c.b16 %v636, %v634
    %669 = vmatprep.subr.bf16.mxu0 %v652
    %670 = vmatpush1.bf16.msra.mxu0 %v651
    %671 = vmatprep.subr.bf16.mxu0 %v650
    %672 = vmatpush1.bf16.msra.mxu0 %v649
    %673 = vmatprep.subr.bf16.mxu0 %v648
    %674 = vmatpush1.bf16.msra.mxu0 %v647
    %675 = vmatprep.subr.bf16.mxu0 %v646
    %676 = vmatpush1.bf16.msra.mxu0 %v645
    %677 = vmatprep.subr.bf16.mxu0 %v644
    %678 = vmatpush1.bf16.msra.mxu0 %v643
    %679 = vmatprep.subr.bf16.mxu0 %v642
    %680 = vmatpush1.bf16.msra.mxu0 %v641
    %681 = vmatprep.subr.bf16.mxu0 %v640
    %682 = vmatpush1.bf16.msra.mxu0 %v639
    %683 = vmatprep.subr.bf16.mxu0 %v638
    %684 = vmatpush1.bf16.msra.mxu0 %v637
    %685 = vmatprep.subr.bf16.mxu0 0
    %686 = vmatpush2.bf16.msra.mxu0 0
    %687 = vmatprep.subr.bf16.mxu0 0
    %688 = vmatpush2.bf16.msra.mxu0 0
    %689 = vmatprep.subr.bf16.mxu0 0
    %690 = vmatpush2.bf16.msra.mxu0 0
    %691 = vmatprep.subr.bf16.mxu0 0
    %692 = vmatpush2.bf16.msra.mxu0 0
    %693 = vmatprep.subr.bf16.mxu0 0
    %694 = vmatpush2.bf16.msra.mxu0 0
    %695 = vmatprep.subr.bf16.mxu0 0
    %696 = vmatpush2.bf16.msra.mxu0 0
    %697 = vmatprep.subr.bf16.mxu0 0
    %698 = vmatpush2.bf16.msra.mxu0 0
    %699 = vmatprep.subr.bf16.mxu0 0
    %700 = vmatpush2.bf16.msra.mxu0 0
    %701 = vmatprep.mubr.bf16.mxu0 0
    %702 = vmatmul.mubr.bf16.gmra.mxu0 %v85
    %v703 = vpop.f32.mrf.mxu0
    %v704 = vadd.f32 %v583, %v703
    %v705 = vpop.f32.mrf.mxu0
    %v706 = vadd.f32 %v585, %v705
    %v707 = vpop.f32.mrf.mxu0
    %v708 = vpop.f32.mrf.mxu0
    %709 = vdwg.mxu0
    %v710 = vld [vmem:[%s6] sm:$0x3]
    %v712 = vlaneseq
    %v713 = vshrl.u32 %v712, 7
    %v714 = vsub.s32 0, %v713
    %v715 = vrot.slane %v710, %v714
    %v716 = vlaneseq
    %v717 = vshrl.u32 %v716, 7
    %v718 = vsub.s32 1, %v717
    %v719 = vrot.slane %v710, %v718
    %v722 = vadd.f32 %v704, %v715
    %v723 = vadd.f32 %v706, %v719
    %724 = vst [vmem:[%s9] sm:$0xff] %v722
    %725 = vst [vmem:[%s9 + $0x8] sm:$0xff] %v723
    // Predicated region
    $region46: #{testnet_forward.1} parent=1 // pred_check
      _
    $region47: #{testnet_forward.1} parent=1 // pred_check_branch
      %727 = sbr.rel (0) target = $region49
    $region48: #{testnet_forward.1} parent=1 // pred_region
      _
    $region49: #{testnet_forward.1} parent=1 // pred_fallthru
      _
    // Predicated region
    $region50: #{testnet_forward.1} parent=1 // pred_check
      _
    $region51: #{testnet_forward.1} parent=1 // pred_check_branch
      %729 = sbr.rel (0) target = $region53
    $region52: #{testnet_forward.1} parent=1 // pred_region
      _
    $region53: #{testnet_forward.1} parent=1 // pred_fallthru
      _
    // Predicated region
    $region54: #{testnet_forward.1} parent=1 // pred_check
      _
    $region55: #{testnet_forward.1} parent=1 // pred_check_branch
      %731 = sbr.rel (0) target = $region57
    $region56: #{testnet_forward.1} parent=1 // pred_region
      _
    $region57: #{testnet_forward.1} parent=1 // pred_fallthru
      _
    // Predicated region
    $region58: #{testnet_forward.1} parent=1 // pred_check
      _
    $region59: #{testnet_forward.1} parent=1 // pred_check_branch
      %733 = sbr.rel (0) target = $region61
    $region60: #{testnet_forward.1} parent=1 // pred_region
      _
    $region61: #{testnet_forward.1} parent=1 // pred_fallthru
      _
    // Predicated region
    $region62: #{testnet_forward.1} parent=1 // pred_check
      _
    $region63: #{testnet_forward.1} parent=1 // pred_check_branch
      %735 = sbr.rel (0) target = $region65
    $region64: #{testnet_forward.1} parent=1 // pred_region
      _
    $region65: #{testnet_forward.1} parent=1 // pred_fallthru
      _
    // Predicated region
    $region66: #{testnet_forward.1} parent=1 // pred_check
      _
    $region67: #{testnet_forward.1} parent=1 // pred_check_branch
      %737 = sbr.rel (0) target = $region69
    $region68: #{testnet_forward.1} parent=1 // pred_region
      _
    $region69: #{testnet_forward.1} parent=1 // pred_fallthru
      _
    %738 = vsyncpa [#allocation3], 1
    %739 = vsyncpa [#allocation5], 1
    %740 = vsyncpa [#allocation8], 1

</llo_original>
